<compile_context>
chip_gen: v6e
topology: v6e:2x2x1
jax: 0.10.0
libtpu: 0.0.40
codegen_flags: <defaults>
</compile_context>

<pallas_src>
import functools

import jax
import jax.numpy as jnp
from jax.experimental import pallas as pl
from jax.experimental.pallas import tpu as pltpu


def _macoef_kernel(coef_ref, mt_ref, x_ref, o_ref, *, rows, cols):
    # coef_ref: SMEM (rows, cols)        f32  scalar coefficients
    # mt_ref:   VMEM (cols, nn, r_pad)   f32  flattened M(r,c)^T columns, grouped by
    #                                         power c, zero-padded over r
    # x_ref:    VMEM (tb, nn)            f32  tb graphs, native row-major flatten,
    #                                         one graph per sublane row
    # o_ref:    VMEM (tb, 1)             f32  per-step distinct output block
    x = x_ref[...]                                     # (tb, nn)
    acc = jnp.zeros(o_ref.shape, jnp.float32)          # (tb, 1)

    xp = x                                             # x ** 1
    for c in range(cols):
        if c > 0:
            xp = xp * x                                # x ** (c + 1), incremental (VPU)
        # trace(M(r,c) @ x**(c+1)) for all tb graphs and all r at once, on the MXU:
        #   tr[g, r] = sum_k xp[g, k] * mt[c, k, r]
        tr = jnp.dot(xp, mt_ref[c], preferred_element_type=jnp.float32)   # (tb, r_pad)
        for r in range(rows):
            acc = acc + coef_ref[r, c] * tr[:, r:r + 1] ** (r + 1)

    o_ref[...] = acc


def _rup(a, m):
    return ((a + m - 1) // m) * m


def _cdiv(a, b):
    return (a + b - 1) // b


def macoef_forward(x, m_stack, coef, *, tb=None, tb_max=1024,
                   vmem_budget_bytes=12 << 20):
    """Pallas implementation of MACoef.forward.

    x:       any shape reshapeable to (-1, N, N)
    m_stack: (rows*cols, N, N) float32   (m_stack[r*cols + c] == M(r, c))
    coef:    (rows, cols)      float32
    tb:      optional explicit batch-tile size (graphs per grid step)
    returns: (B,) float32
    """
    rows, cols = coef.shape
    n = m_stack.shape[-1]
    nn = n * n
    x = jnp.reshape(x, (-1, n, n)).astype(jnp.float32)
    batch = x.shape[0]

    # --- batch tiling: large VMEM-capped tiles, >=2 steps for big batches -------
    if tb is None:
        # cap tb so the double-buffered x tile stays within every generation's
        # scoped VMEM default (v5e 16 MiB, v6e/v7x 32 MiB): 2 * tb * nn * 4 bytes.
        cap = max(8, (vmem_budget_bytes // (nn * 4 * 2)) // 8 * 8)
        tb_lim = max(8, min(tb_max, cap))
        b8 = _rup(batch, 8)
        n_steps = _cdiv(b8, tb_lim)
        if b8 >= 1024:
            n_steps = max(n_steps, 2)        # keep both v7x TensorCores busy
        tb = min(_rup(_cdiv(b8, n_steps), 8), tb_lim)
    else:
        tb = _rup(max(int(tb), 8), 8)
    n_steps = _cdiv(batch, tb)
    b_pad = n_steps * tb

    # --- layout plumbing (wrapper side, one-time) --------------------------------
    # x in its native row-major layout; reshape (B, n, n) -> (B, nn) is free.
    x_flat = x.reshape(batch, nn)
    if b_pad != batch:
        # zero graphs -> zero traces -> zero contributions; sliced away below.
        # (Skipped entirely when the batch is already tile-aligned.)
        x_flat = jnp.pad(x_flat, ((0, b_pad - batch), (0, 0)))

    # M re-layout so trace(M(r,c) @ x**p) == sum_k mt[c, k, r] * xflat_p[k]:
    #   mt[c, j*n + i, r] = M(r, c)[i, j]   (flattened M^T, row-major)
    r_pad = _rup(rows, 8)      # pad the tiny r axis with zero columns (MXU rhs)
    m = m_stack.astype(jnp.float32).reshape(rows, cols, n, n)
    mt = jnp.transpose(m, (1, 3, 2, 0)).reshape(cols, nn, rows)
    if r_pad != rows:
        mt = jnp.pad(mt, ((0, 0), (0, 0), (0, r_pad - rows)))

    kernel = functools.partial(_macoef_kernel, rows=rows, cols=cols)

    out = pl.pallas_call(
        kernel,
        out_shape=jax.ShapeDtypeStruct((b_pad, 1), jnp.float32),
        grid_spec=pltpu.PrefetchScalarGridSpec(
            num_scalar_prefetch=0,
            grid=(n_steps,),
            in_specs=[
                # coefficients in SMEM (scalar reads inside the kernel)
                pl.BlockSpec((rows, cols), lambda b: (0, 0),
                             memory_space=pltpu.MemorySpace.SMEM),
                # full (re-laid-out, KiB-scale) M stack resident in VMEM;
                # constant index map -> not re-fetched every step
                pl.BlockSpec((cols, nn, r_pad), lambda b: (0, 0, 0)),
                # tb graphs per grid step, native row-major layout
                pl.BlockSpec((tb, nn), lambda b: (b, 0)),
            ],
            # distinct output block per step -> batch axis can be parallel
            out_specs=pl.BlockSpec((tb, 1), lambda b: (b, 0)),
        ),
        compiler_params=pltpu.CompilerParams(
            dimension_semantics=("parallel",)),
    )(coef.astype(jnp.float32), mt, x_flat)

    return out[:batch, 0]


def macoef_reference(x, m_stack, coef):
    """Plain-JAX reference mirroring the PyTorch module."""
    rows, cols = coef.shape
    n = m_stack.shape[-1]
    x = jnp.reshape(x, (-1, n, n)).astype(jnp.float32)

    def per_graph(xi):
        outs = []
        for r in range(rows):
            for c in range(cols):
                v = jnp.matmul(m_stack[r * cols + c], xi ** (c + 1),
                               precision=jax.lax.Precision.HIGHEST)
                outs.append(jnp.trace(v) ** (r + 1))
        return jnp.sum(coef * jnp.stack(outs).reshape(rows, cols))

    return jax.vmap(per_graph)(x)


def _make_inputs(key, graph_size, rows, cols, batch):
    k_m, k_c, k_x = jax.random.split(key, 3)
    # Deterministic "kaiming_normal_" init (fan_in mode, gain = sqrt(2)).
    m_std = jnp.sqrt(2.0 / graph_size)   # fan_in of an (N, N) weight is N
    c_std = jnp.sqrt(2.0 / cols)         # fan_in of (rows, cols) is cols
    m_stack = (jax.random.normal(k_m, (rows * cols, graph_size, graph_size),
                                 jnp.float32) * m_std)
    coef = jax.random.normal(k_c, (rows, cols), jnp.float32) * c_std
    x = jax.random.normal(k_x, (batch, graph_size, graph_size), jnp.float32)
    return x, m_stack, coef


if __name__ == "__main__":
    # Config A: module defaults (rows=1, cols=2), N=16, batch=2.
    xA, mA, cA = _make_inputs(jax.random.PRNGKey(0), 16, 1, 2, 2)
    outA = jax.block_until_ready(macoef_forward(xA, mA, cA))
    refA = macoef_reference(xA, mA, cA)
    assert outA.shape == (2,), outA.shape
    assert jnp.allclose(outA, refA, rtol=1e-2, atol=1e-2), (outA, refA)

    # Config B: rows=2, cols=3, batch=5 — higher matrix / trace powers + batch pad.
    xB, mB, cB = _make_inputs(jax.random.PRNGKey(1), 16, 2, 3, 5)
    outB = jax.block_until_ready(macoef_forward(xB, mB, cB))
    refB = macoef_reference(xB, mB, cB)
    assert outB.shape == (5,), outB.shape
    assert jnp.allclose(outB, refB, rtol=1e-2, atol=1e-2), (outB, refB)

    # Config C: batch=40 with an explicit small tile -> multi-step grid,
    # padded last tile, "parallel" batch axis all exercised.
    xC, mC, cC = _make_inputs(jax.random.PRNGKey(2), 16, 2, 2, 40)
    outC = jax.block_until_ready(macoef_forward(xC, mC, cC, tb=16))
    refC = macoef_reference(xC, mC, cC)
    assert outC.shape == (40,), outC.shape
    assert jnp.allclose(outC, refC, rtol=1e-2, atol=1e-2), (outC, refC)

    print("KERNEL_OK")
</pallas_src>

<mosaic_0001>
module attributes {stable_mosaic.version = 11 : i64} {
  func.func @_macoef_kernel(%arg0: i32, %arg1: memref<1x2xf32, #tpu.memory_space<smem>>, %arg2: memref<2x256x8xf32, #tpu.memory_space<vmem>>, %arg3: memref<8x256xf32, #tpu.memory_space<vmem>>, %arg4: memref<8x1xf32, #tpu.memory_space<vmem>>) attributes {dimension_semantics = [#tpu.dimension_semantics<parallel>], iteration_bounds = array<i64: 1>, scalar_prefetch = 0 : i64, scratch_operands = 0 : i64, tpu.core_type = #tpu.core_type<tc>, window_params = [{transform_indices = @transform_0, window_bounds = array<i64: 1, 2>}, {pipeline_mode = #tpu.pipeline_mode<synchronous>, transform_indices = @transform_1, window_bounds = array<i64: 2, 256, 8>}, {transform_indices = @transform_2, window_bounds = array<i64: 8, 256>}, {transform_indices = @transform_3, window_bounds = array<i64: 8, 1>}]} {
    %c0 = arith.constant 0 : index
    %c0_0 = arith.constant 0 : index
    %0 = vector.load %arg3[%c0, %c0_0] : memref<8x256xf32, #tpu.memory_space<vmem>>, vector<8x256xf32>
    %cst = arith.constant 0.000000e+00 : f32
    %1 = vector.broadcast %cst : f32 to vector<8x1xf32>
    %c0_1 = arith.constant 0 : index
    %c0_2 = arith.constant 0 : index
    %c0_3 = arith.constant 0 : index
    %2 = vector.load %arg2[%c0_1, %c0_2, %c0_3] : memref<2x256x8xf32, #tpu.memory_space<vmem>>, vector<1x256x8xf32>
    %3 = vector.shape_cast %2 : vector<1x256x8xf32> to vector<256x8xf32>
    %cst_4 = arith.constant dense<0.000000e+00> : vector<8x8xf32>
    %4 = tpu.matmul %0, %3, %cst_4 {dimension_numbers = #tpu.dot_dimension_numbers<[1], [0], [0], [1], [0, 0, 1, 1], [], []>} : vector<8x256xf32>, vector<256x8xf32>, vector<8x8xf32> -> vector<8x8xf32>
    %c0_5 = arith.constant 0 : index
    %c0_6 = arith.constant 0 : index
    %5 = memref.load %arg1[%c0_5, %c0_6] : memref<1x2xf32, #tpu.memory_space<smem>>
    %6 = vector.extract_strided_slice %4 {offsets = [0, 0], sizes = [8, 1], strides = [1, 1]} : vector<8x8xf32> to vector<8x1xf32>
    %7 = vector.broadcast %5 : f32 to vector<8x1xf32>
    %8 = arith.mulf %7, %6 : vector<8x1xf32>
    %9 = arith.addf %1, %8 : vector<8x1xf32>
    %10 = arith.mulf %0, %0 : vector<8x256xf32>
    %c1 = arith.constant 1 : index
    %c0_7 = arith.constant 0 : index
    %c0_8 = arith.constant 0 : index
    %11 = vector.load %arg2[%c1, %c0_7, %c0_8] : memref<2x256x8xf32, #tpu.memory_space<vmem>>, vector<1x256x8xf32>
    %12 = vector.shape_cast %11 : vector<1x256x8xf32> to vector<256x8xf32>
    %cst_9 = arith.constant dense<0.000000e+00> : vector<8x8xf32>
    %13 = tpu.matmul %10, %12, %cst_9 {dimension_numbers = #tpu.dot_dimension_numbers<[1], [0], [0], [1], [0, 0, 1, 1], [], []>} : vector<8x256xf32>, vector<256x8xf32>, vector<8x8xf32> -> vector<8x8xf32>
    %c0_10 = arith.constant 0 : index
    %c1_11 = arith.constant 1 : index
    %14 = memref.load %arg1[%c0_10, %c1_11] : memref<1x2xf32, #tpu.memory_space<smem>>
    %15 = vector.extract_strided_slice %13 {offsets = [0, 0], sizes = [8, 1], strides = [1, 1]} : vector<8x8xf32> to vector<8x1xf32>
    %16 = vector.broadcast %14 : f32 to vector<8x1xf32>
    %17 = arith.mulf %16, %15 : vector<8x1xf32>
    %18 = arith.addf %9, %17 : vector<8x1xf32>
    %c0_12 = arith.constant 0 : index
    %c0_13 = arith.constant 0 : index
    %19 = vector.load %arg4[%c0_12, %c0_13] : memref<8x1xf32, #tpu.memory_space<vmem>>, vector<8x1xf32>
    tpu.vector_store %arg4[%c0_12, %c0_13], %18 {strides = array<i32>} : memref<8x1xf32, #tpu.memory_space<vmem>>, vector<8x1xf32>,
    return
  }
  func.func @transform_0(%arg0: i32) -> (i32, i32) {
    %c0_i32 = arith.constant 0 : i32
    %c0_i32_0 = arith.constant 0 : i32
    %c0_i32_1 = arith.constant 0 : i32
    return %c0_i32, %c0_i32_0 : i32, i32
  }
  func.func @transform_1(%arg0: i32) -> (i32, i32, i32) {
    %c0_i32 = arith.constant 0 : i32
    %c0_i32_0 = arith.constant 0 : i32
    %c0_i32_1 = arith.constant 0 : i32
    %c0_i32_2 = arith.constant 0 : i32
    return %c0_i32, %c0_i32_0, %c0_i32_1 : i32, i32, i32
  }
  func.func @transform_2(%arg0: i32) -> (i32, i32) {
    %c0_i32 = arith.constant 0 : i32
    %c0_i32_0 = arith.constant 0 : i32
    return %arg0, %c0_i32 : i32, i32
  }
  func.func @transform_3(%arg0: i32) -> (i32, i32) {
    %c0_i32 = arith.constant 0 : i32
    %c0_i32_0 = arith.constant 0 : i32
    return %arg0, %c0_i32 : i32, i32
  }
}

</mosaic_0001>

<llo_original>
// kernel: tpu_custom_call.1
$region0: #{tpu_custom_call.1}
  #allocation0 [shape = 'u32[]', space=smem, size = 0x4, offset = 0x4, fixed_abs, tag = 'smem constant byte address 0x4 - core index']
  #allocation1 [shape = 'u32[144,128]{1,0:T(1,128)}', space=vmem, size = 0x12000, scoped, tag = 'internal scratch']
  %s0 = inlined_call_operand.vmem [shape: f32[1,2], index: 0, kind: input, shape index: {}]
  %s1 = inlined_call_operand.vmem [shape: f32[2,256,8], index: 1, kind: input, shape index: {}]
  %s2 = inlined_call_operand.vmem [shape: f32[8,256], index: 2, kind: input, shape index: {}]
  %s3 = inlined_call_operand.vmem [shape: f32[8,1], index: 3, kind: output, shape index: {}]
  %s4 = sld [smem:[#allocation0]]
  $region26: #{tpu_custom_call.1} parent=0
    _
  %s6 = ssub.s32 1, %s4
  %s7 = scalar_select 0, %s6, %s4
  $region1: #{tpu_custom_call.1} parent=0
    #allocation2 [shape = 'u8[512]{0}', space=smem, size = 0x200, scoped, tag = 'input window, operand 0, single buffered']
    #allocation3 [shape = 's32[1]{0}', space=sflag, size = 0x4, scoped, tag = 'scoped memory for tpu_custom_call.1']
    %8 = vsyncpa [#allocation3], 0
    // Predicated region
    $region2: #{tpu_custom_call.1} parent=1 // pred_check
      _
    $region3: #{tpu_custom_call.1} parent=1 // pred_check_branch
      %10 = sbr.rel (0) target = $region5
    $region4: #{tpu_custom_call.1} parent=1 // pred_region
      %s12 = ssub.s32 16, 16
      %13 = vsyncadd [#allocation3], %s12
      %s15 = sshll.u32 %s0, 4
      %s16 = int_to_ptr.vmem [resolvable:$true] %s15
      %18 = dma.vmem_to_smem %s16, 16, [#allocation2], [#allocation3]
    $region5: #{tpu_custom_call.1} parent=1 // pred_fallthru
      _
    // Predicated region
    $region6: #{tpu_custom_call.1} parent=1 // pred_check
      _
    $region7: #{tpu_custom_call.1} parent=1 // pred_check_branch
      %20 = sbr.rel (0) target = $region9
    $region8: #{tpu_custom_call.1} parent=1 // pred_region
      _
    $region9: #{tpu_custom_call.1} parent=1 // pred_fallthru
      _
    // Predicated region
    $region10: #{tpu_custom_call.1} parent=1 // pred_check
      _
    $region11: #{tpu_custom_call.1} parent=1 // pred_check_branch
      %22 = sbr.rel (0) target = $region13
    $region12: #{tpu_custom_call.1} parent=1 // pred_region
      _
    $region13: #{tpu_custom_call.1} parent=1 // pred_fallthru
      _
    // Predicated region
    $region14: #{tpu_custom_call.1} parent=1 // pred_check
      _
    $region15: #{tpu_custom_call.1} parent=1 // pred_check_branch
      %24 = sbr.rel (0) target = $region17
    $region16: #{tpu_custom_call.1} parent=1 // pred_region
      %25 = dma.done [#allocation3], 16
    $region17: #{tpu_custom_call.1} parent=1 // pred_fallthru
      _
    %26 = sfence
    %v27 = vld [vmem:[%s2] sm:$0xff]
    %v28 = vld [vmem:[%s2 + $0x8] sm:$0xff]
    %v29 = vld [vmem:[%s1] sm:$0xff]
    %v30 = vld [vmem:[%s1 + $0x8] sm:$0xff]
    %v31 = vld [vmem:[%s1 + $0x10] sm:$0xff]
    %v32 = vld [vmem:[%s1 + $0x18] sm:$0xff]
    %v33 = vld [vmem:[%s1 + $0x20] sm:$0xff]
    %v34 = vld [vmem:[%s1 + $0x28] sm:$0xff]
    %v35 = vld [vmem:[%s1 + $0x30] sm:$0xff]
    %v36 = vld [vmem:[%s1 + $0x38] sm:$0xff]
    %v37 = vld [vmem:[%s1 + $0x40] sm:$0xff]
    %v38 = vld [vmem:[%s1 + $0x48] sm:$0xff]
    %v39 = vld [vmem:[%s1 + $0x50] sm:$0xff]
    %v40 = vld [vmem:[%s1 + $0x58] sm:$0xff]
    %v41 = vld [vmem:[%s1 + $0x60] sm:$0xff]
    %v42 = vld [vmem:[%s1 + $0x68] sm:$0xff]
    %v43 = vld [vmem:[%s1 + $0x70] sm:$0xff]
    %v44 = vld [vmem:[%s1 + $0x78] sm:$0xff]
    %v45 = vld [vmem:[%s1 + $0x80] sm:$0xff]
    %v46 = vld [vmem:[%s1 + $0x88] sm:$0xff]
    %v47 = vld [vmem:[%s1 + $0x90] sm:$0xff]
    %v48 = vld [vmem:[%s1 + $0x98] sm:$0xff]
    %v49 = vld [vmem:[%s1 + $0xa0] sm:$0xff]
    %v50 = vld [vmem:[%s1 + $0xa8] sm:$0xff]
    %v51 = vld [vmem:[%s1 + $0xb0] sm:$0xff]
    %v52 = vld [vmem:[%s1 + $0xb8] sm:$0xff]
    %v53 = vld [vmem:[%s1 + $0xc0] sm:$0xff]
    %v54 = vld [vmem:[%s1 + $0xc8] sm:$0xff]
    %v55 = vld [vmem:[%s1 + $0xd0] sm:$0xff]
    %v56 = vld [vmem:[%s1 + $0xd8] sm:$0xff]
    %v57 = vld [vmem:[%s1 + $0xe0] sm:$0xff]
    %v58 = vld [vmem:[%s1 + $0xe8] sm:$0xff]
    %v59 = vld [vmem:[%s1 + $0xf0] sm:$0xff]
    %v60 = vld [vmem:[%s1 + $0xf8] sm:$0xff]
    %61 = vmatprep.subr.mxu0 0.0
    %62 = vmatpush1.msra.mxu0 %v44
    %63 = vmatprep.subr.mxu0 0.0
    %64 = vmatpush1.msra.mxu0 %v43
    %65 = vmatprep.subr.mxu0 0.0
    %66 = vmatpush1.msra.mxu0 %v42
    %67 = vmatprep.subr.mxu0 0.0
    %68 = vmatpush1.msra.mxu0 %v41
    %69 = vmatprep.subr.mxu0 0.0
    %70 = vmatpush1.msra.mxu0 %v40
    %71 = vmatprep.subr.mxu0 0.0
    %72 = vmatpush1.msra.mxu0 %v39
    %73 = vmatprep.subr.mxu0 0.0
    %74 = vmatpush1.msra.mxu0 %v38
    %75 = vmatprep.subr.mxu0 0.0
    %76 = vmatpush1.msra.mxu0 %v37
    %77 = vmatprep.subr.mxu0 0.0
    %78 = vmatpush1.msra.mxu0 %v36
    %79 = vmatprep.subr.mxu0 0.0
    %80 = vmatpush1.msra.mxu0 %v35
    %81 = vmatprep.subr.mxu0 0.0
    %82 = vmatpush1.msra.mxu0 %v34
    %83 = vmatprep.subr.mxu0 0.0
    %84 = vmatpush1.msra.mxu0 %v33
    %85 = vmatprep.subr.mxu0 0.0
    %86 = vmatpush1.msra.mxu0 %v32
    %87 = vmatprep.subr.mxu0 0.0
    %88 = vmatpush1.msra.mxu0 %v31
    %89 = vmatprep.subr.mxu0 0.0
    %90 = vmatpush1.msra.mxu0 %v30
    %91 = vmatprep.subr.mxu0 0.0
    %92 = vmatpush1.msra.mxu0 %v29
    %93 = vmatprep.subr.mxu0 0.0
    %94 = vmatpush2.msra.mxu0 %v60
    %95 = vmatprep.subr.mxu0 0.0
    %96 = vmatpush2.msra.mxu0 %v59
    %97 = vmatprep.subr.mxu0 0.0
    %98 = vmatpush2.msra.mxu0 %v58
    %99 = vmatprep.subr.mxu0 0.0
    %100 = vmatpush2.msra.mxu0 %v57
    %101 = vmatprep.subr.mxu0 0.0
    %102 = vmatpush2.msra.mxu0 %v56
    %103 = vmatprep.subr.mxu0 0.0
    %104 = vmatpush2.msra.mxu0 %v55
    %105 = vmatprep.subr.mxu0 0.0
    %106 = vmatpush2.msra.mxu0 %v54
    %107 = vmatprep.subr.mxu0 0.0
    %108 = vmatpush2.msra.mxu0 %v53
    %109 = vmatprep.subr.mxu0 0.0
    %110 = vmatpush2.msra.mxu0 %v52
    %111 = vmatprep.subr.mxu0 0.0
    %112 = vmatpush2.msra.mxu0 %v51
    %113 = vmatprep.subr.mxu0 0.0
    %114 = vmatpush2.msra.mxu0 %v50
    %115 = vmatprep.subr.mxu0 0.0
    %116 = vmatpush2.msra.mxu0 %v49
    %117 = vmatprep.subr.mxu0 0.0
    %118 = vmatpush2.msra.mxu0 %v48
    %119 = vmatprep.subr.mxu0 0.0
    %120 = vmatpush2.msra.mxu0 %v47
    %121 = vmatprep.subr.mxu0 0.0
    %122 = vmatpush2.msra.mxu0 %v46
    %123 = vmatprep.subr.mxu0 0.0
    %124 = vmatpush2.msra.mxu0 %v45
    %125 = vmatprep.mubr.f32.mxu0 %v28
    %126 = vmatmul.mubr.f32.gmra.mxu0 %v27
    %v127 = vpop.f32.mrf.mxu0
    %v128 = vadd.f32 0.0, %v127
    %v129 = vpop.f32.mrf.mxu0
    %130 = vdwg.mxu0
    %s131 = sld [smem:[#allocation2]]
    %v132 = vstv %s131
    %v133 = vmul.f32 %v132, %v128
    %v134 = vadd.f32 %v133, 0.0
    %v135 = vmul.f32 %v27, %v27
    %v136 = vmul.f32 %v28, %v28
    %s137 = scalar_lea.vmem %s1, 256
    %v138 = vld [vmem:[%s137] sm:$0xff]
    %v139 = vld [vmem:[%s137 + $0x8] sm:$0xff]
    %v140 = vld [vmem:[%s137 + $0x10] sm:$0xff]
    %v141 = vld [vmem:[%s137 + $0x18] sm:$0xff]
    %v142 = vld [vmem:[%s137 + $0x20] sm:$0xff]
    %v143 = vld [vmem:[%s137 + $0x28] sm:$0xff]
    %v144 = vld [vmem:[%s137 + $0x30] sm:$0xff]
    %v145 = vld [vmem:[%s137 + $0x38] sm:$0xff]
    %v146 = vld [vmem:[%s137 + $0x40] sm:$0xff]
    %v147 = vld [vmem:[%s137 + $0x48] sm:$0xff]
    %v148 = vld [vmem:[%s137 + $0x50] sm:$0xff]
    %v149 = vld [vmem:[%s137 + $0x58] sm:$0xff]
    %v150 = vld [vmem:[%s137 + $0x60] sm:$0xff]
    %v151 = vld [vmem:[%s137 + $0x68] sm:$0xff]
    %v152 = vld [vmem:[%s137 + $0x70] sm:$0xff]
    %v153 = vld [vmem:[%s137 + $0x78] sm:$0xff]
    %v154 = vld [vmem:[%s137 + $0x80] sm:$0xff]
    %v155 = vld [vmem:[%s137 + $0x88] sm:$0xff]
    %v156 = vld [vmem:[%s137 + $0x90] sm:$0xff]
    %v157 = vld [vmem:[%s137 + $0x98] sm:$0xff]
    %v158 = vld [vmem:[%s137 + $0xa0] sm:$0xff]
    %v159 = vld [vmem:[%s137 + $0xa8] sm:$0xff]
    %v160 = vld [vmem:[%s137 + $0xb0] sm:$0xff]
    %v161 = vld [vmem:[%s137 + $0xb8] sm:$0xff]
    %v162 = vld [vmem:[%s137 + $0xc0] sm:$0xff]
    %v163 = vld [vmem:[%s137 + $0xc8] sm:$0xff]
    %v164 = vld [vmem:[%s137 + $0xd0] sm:$0xff]
    %v165 = vld [vmem:[%s137 + $0xd8] sm:$0xff]
    %v166 = vld [vmem:[%s137 + $0xe0] sm:$0xff]
    %v167 = vld [vmem:[%s137 + $0xe8] sm:$0xff]
    %v168 = vld [vmem:[%s137 + $0xf0] sm:$0xff]
    %v169 = vld [vmem:[%s137 + $0xf8] sm:$0xff]
    %170 = vmatprep.subr.mxu0 0.0
    %171 = vmatpush1.msra.mxu0 %v153
    %172 = vmatprep.subr.mxu0 0.0
    %173 = vmatpush1.msra.mxu0 %v152
    %174 = vmatprep.subr.mxu0 0.0
    %175 = vmatpush1.msra.mxu0 %v151
    %176 = vmatprep.subr.mxu0 0.0
    %177 = vmatpush1.msra.mxu0 %v150
    %178 = vmatprep.subr.mxu0 0.0
    %179 = vmatpush1.msra.mxu0 %v149
    %180 = vmatprep.subr.mxu0 0.0
    %181 = vmatpush1.msra.mxu0 %v148
    %182 = vmatprep.subr.mxu0 0.0
    %183 = vmatpush1.msra.mxu0 %v147
    %184 = vmatprep.subr.mxu0 0.0
    %185 = vmatpush1.msra.mxu0 %v146
    %186 = vmatprep.subr.mxu0 0.0
    %187 = vmatpush1.msra.mxu0 %v145
    %188 = vmatprep.subr.mxu0 0.0
    %189 = vmatpush1.msra.mxu0 %v144
    %190 = vmatprep.subr.mxu0 0.0
    %191 = vmatpush1.msra.mxu0 %v143
    %192 = vmatprep.subr.mxu0 0.0
    %193 = vmatpush1.msra.mxu0 %v142
    %194 = vmatprep.subr.mxu0 0.0
    %195 = vmatpush1.msra.mxu0 %v141
    %196 = vmatprep.subr.mxu0 0.0
    %197 = vmatpush1.msra.mxu0 %v140
    %198 = vmatprep.subr.mxu0 0.0
    %199 = vmatpush1.msra.mxu0 %v139
    %200 = vmatprep.subr.mxu0 0.0
    %201 = vmatpush1.msra.mxu0 %v138
    %202 = vmatprep.subr.mxu0 0.0
    %203 = vmatpush2.msra.mxu0 %v169
    %204 = vmatprep.subr.mxu0 0.0
    %205 = vmatpush2.msra.mxu0 %v168
    %206 = vmatprep.subr.mxu0 0.0
    %207 = vmatpush2.msra.mxu0 %v167
    %208 = vmatprep.subr.mxu0 0.0
    %209 = vmatpush2.msra.mxu0 %v166
    %210 = vmatprep.subr.mxu0 0.0
    %211 = vmatpush2.msra.mxu0 %v165
    %212 = vmatprep.subr.mxu0 0.0
    %213 = vmatpush2.msra.mxu0 %v164
    %214 = vmatprep.subr.mxu0 0.0
    %215 = vmatpush2.msra.mxu0 %v163
    %216 = vmatprep.subr.mxu0 0.0
    %217 = vmatpush2.msra.mxu0 %v162
    %218 = vmatprep.subr.mxu0 0.0
    %219 = vmatpush2.msra.mxu0 %v161
    %220 = vmatprep.subr.mxu0 0.0
    %221 = vmatpush2.msra.mxu0 %v160
    %222 = vmatprep.subr.mxu0 0.0
    %223 = vmatpush2.msra.mxu0 %v159
    %224 = vmatprep.subr.mxu0 0.0
    %225 = vmatpush2.msra.mxu0 %v158
    %226 = vmatprep.subr.mxu0 0.0
    %227 = vmatpush2.msra.mxu0 %v157
    %228 = vmatprep.subr.mxu0 0.0
    %229 = vmatpush2.msra.mxu0 %v156
    %230 = vmatprep.subr.mxu0 0.0
    %231 = vmatpush2.msra.mxu0 %v155
    %232 = vmatprep.subr.mxu0 0.0
    %233 = vmatpush2.msra.mxu0 %v154
    %234 = vmatprep.mubr.f32.mxu0 %v136
    %235 = vmatmul.mubr.f32.gmra.mxu0 %v135
    %v236 = vpop.f32.mrf.mxu0
    %v237 = vadd.f32 0.0, %v236
    %v238 = vpop.f32.mrf.mxu0
    %239 = vdwg.mxu0
    %s240 = sld [smem:[#allocation2 + $0x1]]
    %v241 = vstv %s240
    %v242 = vmul.f32 %v241, %v237
    %v243 = vadd.f32 %v134, %v242
    %vm244 = vcmask 7168
    %245 = vst.msk [vmem:[%s3] sm:$0xff] %vm244, %v243
    // Predicated region
    $region18: #{tpu_custom_call.1} parent=1 // pred_check
      _
    $region19: #{tpu_custom_call.1} parent=1 // pred_check_branch
      %247 = sbr.rel (0) target = $region21
    $region20: #{tpu_custom_call.1} parent=1 // pred_region
      _
    $region21: #{tpu_custom_call.1} parent=1 // pred_fallthru
      _
    // Predicated region
    $region22: #{tpu_custom_call.1} parent=1 // pred_check
      _
    $region23: #{tpu_custom_call.1} parent=1 // pred_check_branch
      %249 = sbr.rel (0) target = $region25
    $region24: #{tpu_custom_call.1} parent=1 // pred_region
      _
    $region25: #{tpu_custom_call.1} parent=1 // pred_fallthru
      _
    %250 = vsyncpa [#allocation3], 1

</llo_original>
